<compile_context>
chip_gen: v7x
topology: tpu7x:2x2x1
jax: 0.10.0
libtpu: 0.0.40
codegen_flags: <defaults>
</compile_context>

<pallas_src>
import jax
import jax.numpy as jnp
from jax.experimental import pallas as pl
from jax.experimental.pallas import tpu as pltpu


def _mean_pool_kernel(x_ref, mask_ref, o_ref, acc_ref, cnt_ref):
    # x_ref:    (Bt, Ts, H) tile
    # mask_ref: (Bt, Ts)    tile
    # o_ref:    (Bt, H)     output block (resident across the S axis)
    # acc_ref:  (Bt, H)     f32 accumulator scratch
    # cnt_ref:  (Bt, 1)     f32 mask-count scratch
    k = pl.program_id(1)

    @pl.when(k == 0)
    def _init():
        acc_ref[...] = jnp.zeros_like(acc_ref)
        cnt_ref[...] = jnp.zeros_like(cnt_ref)

    x = x_ref[...]                                   # (Bt, Ts, H), input dtype
    m = mask_ref[...]                                # (Bt, Ts)

    # Partial masked sum over this sequence tile, accumulated in float32.
    # Multiply in the input dtype (mask is exactly representable 0/1).
    prod = x * m.astype(x.dtype)[:, :, None]
    acc_ref[...] += jnp.sum(prod, axis=1, dtype=jnp.float32)
    cnt_ref[...] += jnp.sum(m.astype(jnp.float32), axis=1, keepdims=True)

    @pl.when(k == pl.num_programs(1) - 1)
    def _finalize():
        denom = jnp.maximum(cnt_ref[...], jnp.float32(1e-9))     # (Bt, 1)
        o_ref[...] = (acc_ref[...] / denom).astype(o_ref.dtype)


def _pick_block_b(B: int, max_bt: int = 8) -> int:
    # Bt is the sublane dim of the (Bt, H) output / (Bt, Ts) mask tiles, so it
    # must be a multiple of 8 or equal to the full batch.
    for bt in range(min(B, max_bt), 0, -1):
        if B % bt == 0 and (bt % 8 == 0 or bt == B):
            return bt
    return B


def _pick_block_s(S: int, bt: int, H: int, itemsize: int,
                  budget_bytes: int = 2 * 1024 * 1024) -> int:
    # Ts must be a multiple of 128 that divides S (lane dim of the mask tile,
    # sublane dim of the x tile), or the full S.  Pick the largest such Ts
    # whose x block stays within ~2 MiB per buffer.
    if S <= 128:
        return S
    max_ts = max(128, budget_bytes // max(1, bt * H * itemsize))
    best = None
    t = 128
    while t <= min(S, max_ts):
        if S % t == 0:
            best = t
        t += 128
    return best if best is not None else S


def mean_pooling(last_hidden_state: jax.Array, attention_mask: jax.Array) -> jax.Array:
    """Masked mean pooling over the sequence axis (matches the PyTorch module)."""
    B, S, H = last_hidden_state.shape
    assert attention_mask.shape == (B, S)

    x_itemsize = jnp.dtype(last_hidden_state.dtype).itemsize
    m_itemsize = jnp.dtype(attention_mask.dtype).itemsize
    bt = _pick_block_b(B)
    ts = _pick_block_s(S, bt, H, x_itemsize)
    grid = (B // bt, S // ts)

    # Explicit VMEM budget derived from the chosen tiles: 2 buffers for each
    # pipelined operand + accumulator scratch + slack, capped at 64 MiB (v7x).
    x_blk = bt * ts * H * x_itemsize
    m_blk = bt * ts * m_itemsize
    o_blk = bt * H * 4
    scratch = bt * H * 4 + 8 * 128 * 4
    vmem_limit = min(64 * 1024 * 1024,
                     max(2 * (x_blk + m_blk + o_blk) + scratch + (2 << 20),
                         16 * 1024 * 1024))

    return pl.pallas_call(
        _mean_pool_kernel,
        out_shape=jax.ShapeDtypeStruct((B, H), jnp.float32),
        grid_spec=pltpu.PrefetchScalarGridSpec(
            num_scalar_prefetch=0,
            grid=grid,
            in_specs=[
                pl.BlockSpec((bt, ts, H), lambda b, k: (b, k, 0)),
                pl.BlockSpec((bt, ts), lambda b, k: (b, k)),
            ],
            out_specs=pl.BlockSpec((bt, H), lambda b, k: (b, 0)),
            scratch_shapes=[
                pltpu.VMEM((bt, H), jnp.float32),
                pltpu.VMEM((bt, 1), jnp.float32),
            ],
        ),
        compiler_params=pltpu.CompilerParams(
            dimension_semantics=("parallel", "arbitrary"),
            vmem_limit_bytes=vmem_limit,
        ),
    )(last_hidden_state, attention_mask)


def _reference(last_hidden_state, attention_mask):
    # Pure-JAX reference mirroring the PyTorch module exactly.
    mask = attention_mask[..., None].astype(jnp.float32)
    sum_emb = jnp.sum(last_hidden_state.astype(jnp.float32) * mask, axis=1)
    sum_mask = jnp.maximum(jnp.sum(mask, axis=1), 1e-9)
    return sum_emb / sum_mask


if __name__ == "__main__":
    key = jax.random.PRNGKey(0)
    k1, k2 = jax.random.split(key)

    B, S, H = 2, 8, 32
    last_hidden_state = jax.random.normal(k1, (B, S, H), dtype=jnp.float32)
    # Binary attention mask (some padding positions), as float32.
    attention_mask = (jax.random.uniform(k2, (B, S)) > 0.3).astype(jnp.float32)

    out = jax.block_until_ready(mean_pooling(last_hidden_state, attention_mask))
    ref = _reference(last_hidden_state, attention_mask)

    assert out.shape == (B, H)
    assert jnp.allclose(out, ref, atol=1e-5, rtol=1e-5), "mismatch vs reference"

    print("KERNEL_OK")
</pallas_src>

<mosaic_0001>
module attributes {stable_mosaic.version = 11 : i64} {
  func.func @_mean_pool_kernel(%arg0: i32, %arg1: i32, %arg2: memref<2x8x32xf32, #tpu.memory_space<vmem>>, %arg3: memref<2x8xf32, #tpu.memory_space<vmem>>, %arg4: memref<2x32xf32, #tpu.memory_space<vmem>>, %arg5: memref<2x32xf32, #tpu.memory_space<vmem>>, %arg6: memref<2x1xf32, #tpu.memory_space<vmem>>) attributes {dimension_semantics = [#tpu.dimension_semantics<parallel>, #tpu.dimension_semantics<arbitrary>], iteration_bounds = array<i64: 1, 1>, scalar_prefetch = 0 : i64, scratch_operands = 2 : i64, tpu.core_type = #tpu.core_type<tc>, window_params = [{transform_indices = @transform_0, window_bounds = array<i64: 2, 8, 32>}, {transform_indices = @transform_1, window_bounds = array<i64: 2, 8>}, {transform_indices = @transform_2, window_bounds = array<i64: 2, 32>}]} {
    %c0_i32 = arith.constant 0 : i32
    %0 = arith.cmpi eq, %arg1, %c0_i32 : i32
    %1 = arith.extui %0 : i1 to i32
    %c0_i32_0 = arith.constant 0 : i32
    %2 = arith.cmpi ne, %1, %c0_i32_0 : i32
    scf.if %2 {
      %cst_16 = arith.constant 0.000000e+00 : f32
      %20 = vector.broadcast %cst_16 : f32 to vector<2x32xf32>
      %c0_17 = arith.constant 0 : index
      %c0_18 = arith.constant 0 : index
      %21 = vector.load %arg5[%c0_17, %c0_18] : memref<2x32xf32, #tpu.memory_space<vmem>>, vector<2x32xf32>
      tpu.vector_store %arg5[%c0_17, %c0_18], %20 {strides = array<i32>} : memref<2x32xf32, #tpu.memory_space<vmem>>, vector<2x32xf32>,
      %cst_19 = arith.constant 0.000000e+00 : f32
      %22 = vector.broadcast %cst_19 : f32 to vector<2x1xf32>
      %c0_20 = arith.constant 0 : index
      %c0_21 = arith.constant 0 : index
      %23 = vector.load %arg6[%c0_20, %c0_21] : memref<2x1xf32, #tpu.memory_space<vmem>>, vector<2x1xf32>
      tpu.vector_store %arg6[%c0_20, %c0_21], %22 {strides = array<i32>} : memref<2x1xf32, #tpu.memory_space<vmem>>, vector<2x1xf32>,
    } else {
    }
    %c0 = arith.constant 0 : index
    %c0_1 = arith.constant 0 : index
    %c0_2 = arith.constant 0 : index
    %3 = vector.load %arg2[%c0, %c0_1, %c0_2] : memref<2x8x32xf32, #tpu.memory_space<vmem>>, vector<2x8x32xf32>
    %c0_3 = arith.constant 0 : index
    %c0_4 = arith.constant 0 : index
    %4 = vector.load %arg3[%c0_3, %c0_4] : memref<2x8xf32, #tpu.memory_space<vmem>>, vector<2x8xf32>
    %5 = vector.shape_cast %4 : vector<2x8xf32> to vector<2x8x1xf32>
    %6 = vector.broadcast %5 : vector<2x8x1xf32> to vector<2x8x32xf32>
    %7 = arith.mulf %3, %6 : vector<2x8x32xf32>
    %c0_5 = arith.constant 0 : index
    %c0_6 = arith.constant 0 : index
    %8 = vector.load %arg5[%c0_5, %c0_6] : memref<2x32xf32, #tpu.memory_space<vmem>>, vector<2x32xf32>
    %cst = arith.constant dense<0.000000e+00> : vector<2x32xf32>
    %9 = vector.multi_reduction <add>, %7, %cst [1] : vector<2x8x32xf32> to vector<2x32xf32>
    %10 = arith.addf %8, %9 : vector<2x32xf32>
    %c0_7 = arith.constant 0 : index
    %c0_8 = arith.constant 0 : index
    %11 = vector.load %arg5[%c0_7, %c0_8] : memref<2x32xf32, #tpu.memory_space<vmem>>, vector<2x32xf32>
    tpu.vector_store %arg5[%c0_7, %c0_8], %10 {strides = array<i32>} : memref<2x32xf32, #tpu.memory_space<vmem>>, vector<2x32xf32>,
    %c0_9 = arith.constant 0 : index
    %c0_10 = arith.constant 0 : index
    %12 = vector.load %arg6[%c0_9, %c0_10] : memref<2x1xf32, #tpu.memory_space<vmem>>, vector<2x1xf32>
    %cst_11 = arith.constant dense<0.000000e+00> : vector<2xf32>
    %13 = vector.multi_reduction <add>, %4, %cst_11 [1] : vector<2x8xf32> to vector<2xf32>
    %14 = vector.shape_cast %13 : vector<2xf32> to vector<2x1xf32>
    %15 = arith.addf %12, %14 : vector<2x1xf32>
    %c0_12 = arith.constant 0 : index
    %c0_13 = arith.constant 0 : index
    %16 = vector.load %arg6[%c0_12, %c0_13] : memref<2x1xf32, #tpu.memory_space<vmem>>, vector<2x1xf32>
    tpu.vector_store %arg6[%c0_12, %c0_13], %15 {strides = array<i32>} : memref<2x1xf32, #tpu.memory_space<vmem>>, vector<2x1xf32>,
    %c0_i32_14 = arith.constant 0 : i32
    %17 = arith.cmpi eq, %arg1, %c0_i32_14 : i32
    %18 = arith.extui %17 : i1 to i32
    %c0_i32_15 = arith.constant 0 : i32
    %19 = arith.cmpi ne, %18, %c0_i32_15 : i32
    scf.if %19 {
      %c0_16 = arith.constant 0 : index
      %c0_17 = arith.constant 0 : index
      %20 = vector.load %arg6[%c0_16, %c0_17] : memref<2x1xf32, #tpu.memory_space<vmem>>, vector<2x1xf32>
      %cst_18 = arith.constant 9.99999971E-10 : f32
      %21 = vector.broadcast %cst_18 : f32 to vector<2x1xf32>
      %22 = arith.maximumf %20, %21 : vector<2x1xf32>
      %c0_19 = arith.constant 0 : index
      %c0_20 = arith.constant 0 : index
      %23 = vector.load %arg5[%c0_19, %c0_20] : memref<2x32xf32, #tpu.memory_space<vmem>>, vector<2x32xf32>
      %24 = vector.broadcast %22 : vector<2x1xf32> to vector<2x32xf32>
      %25 = arith.divf %23, %24 : vector<2x32xf32>
      %c0_21 = arith.constant 0 : index
      %c0_22 = arith.constant 0 : index
      %26 = vector.load %arg4[%c0_21, %c0_22] : memref<2x32xf32, #tpu.memory_space<vmem>>, vector<2x32xf32>
      tpu.vector_store %arg4[%c0_21, %c0_22], %25 {strides = array<i32>} : memref<2x32xf32, #tpu.memory_space<vmem>>, vector<2x32xf32>,
    } else {
    }
    return
  }
  func.func @transform_0(%arg0: i32, %arg1: i32) -> (i32, i32, i32) {
    %c0_i32 = arith.constant 0 : i32
    %c0_i32_0 = arith.constant 0 : i32
    return %arg0, %arg1, %c0_i32 : i32, i32, i32
  }
  func.func @transform_1(%arg0: i32, %arg1: i32) -> (i32, i32) {
    %c0_i32 = arith.constant 0 : i32
    return %arg0, %arg1 : i32, i32
  }
  func.func @transform_2(%arg0: i32, %arg1: i32) -> (i32, i32) {
    %c0_i32 = arith.constant 0 : i32
    %c0_i32_0 = arith.constant 0 : i32
    return %arg0, %c0_i32 : i32, i32
  }
}

</mosaic_0001>

<llo_original>
// kernel: tpu_custom_call.1
$region0: #{tpu_custom_call.1}
  #allocation0 [shape = 'u32[]', space=smem, size = 0x4, offset = 0x4, fixed_abs, tag = 'smem constant byte address 0x4 - core index']
  #allocation1 [shape = 'u32[144,128]{1,0:T(1,128)}', space=vmem, size = 0x12000, scoped, tag = 'internal scratch']
  #allocation2 [shape = 'f32[2,32]{1,0:T(2,128)}', space=vmem, size = 0x400, scoped, tag = 'scratch operand']
  #allocation3 [shape = 'f32[2,1]{1,0:T(2,128)}', space=vmem, size = 0x400, scoped, tag = 'scratch operand']
  %s0 = inlined_call_operand.hbm [shape: f32[2,8,32], index: 0, kind: input, shape index: {}]
  %s1 = inlined_call_operand.vmem [shape: f32[2,8], index: 1, kind: input, shape index: {}]
  %s2 = inlined_call_operand.hbm [shape: f32[2,32], index: 2, kind: output, shape index: {}]
  %s3 = sld [smem:[#allocation0]]
  $region30: #{tpu_custom_call.1} parent=0
    _
  %s5 = ssub.s32 1, %s3
  %s6 = scalar_select 0, %s5, %s3
  $region1: #{tpu_custom_call.1} parent=0
    #allocation4 [shape = 'u8[8192]{0}', space=vmem, size = 0x2000, scoped, tag = 'input window, operand 0, single buffered']
    #allocation5 [shape = 's32[1]{0}', space=sflag, size = 0x4, scoped, tag = 'scoped memory for tpu_custom_call.1']
    #allocation6 [shape = 's32[1]{0}', space=sflag, size = 0x4, scoped, tag = 'scoped memory for tpu_custom_call.1']
    #allocation7 [shape = 'u8[1024]{0}', space=vmem, size = 0x400, scoped, tag = 'output window, operand 0, single buffered']
    %7 = vsyncpa [#allocation5], 0
    %8 = vsyncpa [#allocation6], 0
    // Predicated region
    $region2: #{tpu_custom_call.1} parent=1 // pred_check
      _
    $region3: #{tpu_custom_call.1} parent=1 // pred_check_branch
      %10 = sbr.rel (0) target = $region5
    $region4: #{tpu_custom_call.1} parent=1 // pred_region
      %s12 = ssub.s32 256, 256
      %13 = vsyncadd [#allocation5], %s12
      %s14 = sshll.u32 [#allocation4], 4
      %s15 = int_to_ptr.vmem [resolvable:$true] %s14
      %20 = dma.hbm_to_vmem [thread:$0]  %s0, 256, %s15, [#allocation5], 128, 128, 8
    $region5: #{tpu_custom_call.1} parent=1 // pred_fallthru
      _
    // Predicated region
    $region6: #{tpu_custom_call.1} parent=1 // pred_check
      _
    $region7: #{tpu_custom_call.1} parent=1 // pred_check_branch
      %22 = sbr.rel (0) target = $region9
    $region8: #{tpu_custom_call.1} parent=1 // pred_region
      _
    $region9: #{tpu_custom_call.1} parent=1 // pred_fallthru
      _
    // Predicated region
    $region10: #{tpu_custom_call.1} parent=1 // pred_check
      _
    $region11: #{tpu_custom_call.1} parent=1 // pred_check_branch
      %24 = sbr.rel (0) target = $region13
    $region12: #{tpu_custom_call.1} parent=1 // pred_region
      %25 = dma.done [#allocation5], 256
    $region13: #{tpu_custom_call.1} parent=1 // pred_fallthru
      _
    %p26 = scmp.eq.s32.totalorder 0, 0
    // Predicated region
    $region14: #{tpu_custom_call.1} parent=1 // pred_check
      %p27 = pneg %p26
    $region15: #{tpu_custom_call.1} parent=1 // pred_check_branch
      %29 = sbr.rel (%p27) target = $region17
    $region16: #{tpu_custom_call.1} parent=1 // pred_region
      %vm30 = vcmask 254976
      %31 = vst.msk [vmem:[#allocation2] sm:$0x3] %vm30, 0.0
      %vm32 = vcmask 1024
      %33 = vst.msk [vmem:[#allocation3] sm:$0x3] %vm32, 0.0
    $region17: #{tpu_custom_call.1} parent=1 // pred_fallthru
      _
    %v34 = vld [vmem:[#allocation4] sm:$0xff]
    %v35 = vld [vmem:[#allocation4 + $0x8] sm:$0xff]
    %v36 = vld [vmem:[%s1] sm:$0x3]
    %v37 = vlaneseq
    %v38 = vshrl.u32 %v37, 7
    %v39 = vsub.s32 0, %v38
    %v40 = vrot.slane %v36, %v39
    %42 = vbcast.lane.b32.xlu0 %v40, 256
    %v43 = vpop.permute.xlu0 %42
    %v44 = vlaneseq
    %v45 = vshrl.u32 %v44, 7
    %v46 = vsub.s32 1, %v45
    %v47 = vrot.slane %v36, %v46
    %49 = vbcast.lane.b32.xlu0 %v47, 256
    %v50 = vpop.permute.xlu0 %49
    %v51 = vmul.f32 %v34, %v43
    %v52 = vmul.f32 %v35, %v50
    %v53 = vld [vmem:[#allocation2] sm:$0x3]
    %vm54 = vcmask 261120
    %v55 = vsel %vm54, %v51, 0.0
    %v56 = vrot.slane %v55, 4
    %v57 = vadd.f32 %v55, %v56
    %v58 = vrot.slane %v57, 2
    %v59 = vadd.f32 %v57, %v58
    %v60 = vrot.slane %v59, 1
    %v61 = vadd.f32 %v59, %v60
    %v62 = vsel %vm54, %v52, 0.0
    %v63 = vrot.slane %v62, 4
    %v64 = vadd.f32 %v62, %v63
    %v65 = vrot.slane %v64, 2
    %v66 = vadd.f32 %v64, %v65
    %v67 = vrot.slane %v66, 1
    %v68 = vadd.f32 %v66, %v67
    %vm71 = vcmask 1041409
    %v72 = vsel %vm71, %v68, %v61
    %v74 = vadd.f32 %v53, %v72
    %vm75 = vcmask 254976
    %76 = vst.msk [vmem:[#allocation2] sm:$0x3] %vm75, %v74
    %v77 = vld [vmem:[#allocation3] sm:$0x3]
    %vm78 = vcmask 58368
    %v79 = vsel %vm78, %v36, 0.0
    %80 = vadd.xlane.f32.xlu0 %v79
    %v81 = vpop.xlane.xlu0 %80
    %v82 = vadd.f32 %v77, %v81
    %vm83 = vcmask 1024
    %84 = vst.msk [vmem:[#allocation3] sm:$0x3] %vm83, %v82
    // Predicated region
    $region18: #{tpu_custom_call.1} parent=1 // pred_check
      %p85 = pneg %p26
    $region19: #{tpu_custom_call.1} parent=1 // pred_check_branch
      %87 = sbr.rel (%p85) target = $region21
    $region20: #{tpu_custom_call.1} parent=1 // pred_region
      %v88 = vld [vmem:[#allocation3] sm:$0x3]
      %v89 = vmax.f32 %v88, 1e-09
      %v90 = vld [vmem:[#allocation2] sm:$0x3]
      %92 = vset.pattern.permute.xlu0 0
      %93 = vperm.xlu0 %92, %v89
      %v94 = vpop.permute.xlu0 %93
      %v96 = vrcp.pop %v94
      %v97 = vmul.f32 %v90, %v96
      %98 = vst.msk [vmem:[#allocation7] sm:$0x3] %vm75, %v97
    $region21: #{tpu_custom_call.1} parent=1 // pred_fallthru
      _
    // Predicated region
    $region22: #{tpu_custom_call.1} parent=1 // pred_check
      _
    $region23: #{tpu_custom_call.1} parent=1 // pred_check_branch
      %100 = sbr.rel (0) target = $region25
    $region24: #{tpu_custom_call.1} parent=1 // pred_region
      %s102 = ssub.s32 32, 32
      %103 = vsyncadd [#allocation6], %s102
      %s105 = sshll.u32 [#allocation7], 4
      %s106 = int_to_ptr.vmem [resolvable:$true] %s105
      %108 = dma.vmem_to_hbm [thread:$0]  %s106, 32, %s2, [#allocation6]
    $region25: #{tpu_custom_call.1} parent=1 // pred_fallthru
      _
    // Predicated region
    $region26: #{tpu_custom_call.1} parent=1 // pred_check
      _
    $region27: #{tpu_custom_call.1} parent=1 // pred_check_branch
      %110 = sbr.rel (0) target = $region29
    $region28: #{tpu_custom_call.1} parent=1 // pred_region
      %111 = dma.done [#allocation6], 32
    $region29: #{tpu_custom_call.1} parent=1 // pred_fallthru
      _
    %112 = vsyncpa [#allocation5], 1
    %113 = vsyncpa [#allocation6], 1

</llo_original>
